<compile_context>
chip_gen: v7x
topology: tpu7x:2x2x1
jax: 0.10.0
libtpu: 0.0.40
codegen_flags: <defaults>
</compile_context>

<pallas_src>
import functools

import jax
import jax.numpy as jnp
from jax.experimental import pallas as pl
from jax.experimental.pallas import tpu as pltpu

EPS = 1e-7        # sccross EPS
BN_EPS = 1e-5     # torch.nn.BatchNorm1d default eps


def _round_up(x, m):
    return (x + m - 1) // m * m


def _leaky_relu(z, negative_slope=0.2):
    return jnp.where(z > 0, z, negative_slope * z)


def _softplus(z):
    # numerically stable softplus
    return jnp.maximum(z, 0.0) + jnp.log1p(jnp.exp(-jnp.abs(z)))


def _nb_encoder_kernel(half, xalt_ref, w0_ref, b0_ref, w1_ref, b1_ref,
                       wh_ref, bh_ref, y_ref):
    """Whole encoder MLP on one batch tile; eval-mode BN folded into weights.

    Fused output layout (lane-dense, W = 2*half lanes):
      lanes [0, half)       : loc logits              (identity)
      lanes [half, 2*half)  : std logits -> softplus(.) + EPS
    """
    # layer 0: Linear -> LeakyReLU      (BN0 affine folded into w1/b1)
    h = xalt_ref[...].astype(jnp.bfloat16)        # f32 DMA, bf16 cast on VPU
    z = jnp.dot(h, w0_ref[...], preferred_element_type=jnp.float32) + b0_ref[...]
    a = _leaky_relu(z)

    # layer 1: Linear -> LeakyReLU      (BN1 affine folded into head weights)
    z = jnp.dot(a.astype(jnp.bfloat16), w1_ref[...],
                preferred_element_type=jnp.float32) + b1_ref[...]
    a = _leaky_relu(z)

    # fused heads: single (h_dim, 2*half) matmul, per-lane softplus selection
    z = jnp.dot(a.astype(jnp.bfloat16), wh_ref[...],
                preferred_element_type=jnp.float32) + bh_ref[...]
    lane = jax.lax.broadcasted_iota(jnp.int32, z.shape, 1)
    y = jnp.where(lane >= half, _softplus(z) + EPS, z)
    y_ref[...] = y.astype(y_ref.dtype)


@functools.partial(jax.jit, static_argnames=("block_b",))
def nb_data_encoder_forward(x, xalt, params, *, block_b=1024):
    """x, xalt: (B, in_features) float32 -> (loc, std, l).

    loc, std: (B, out_features) f32 parameterizing Normal(loc, std);
    l: (B, 1) f32 normalizer (row sums of x).
    """
    B, d_in = xalt.shape
    h_dim = params["w0"].shape[1]
    out_features = params["w_loc"].shape[1]

    # ---- normalizer: plain XLA row-sum (kept in f32; never enters kernel) ----
    l = jnp.sum(x.astype(jnp.float32), axis=1, keepdims=True)

    # ---- fold eval-mode BatchNorm1d into the downstream Linear weights ----
    def bn_affine(i):
        s = params[f"bn{i}_gamma"] * jax.lax.rsqrt(params[f"bn{i}_var"] + BN_EPS)
        t = params[f"bn{i}_beta"] - params[f"bn{i}_mean"] * s
        return s.astype(jnp.float32), t.astype(jnp.float32)

    s0, t0 = bn_affine(0)
    s1, t1 = bn_affine(1)

    w0 = params["w0"].astype(jnp.bfloat16)
    b0 = params["b0"].reshape(1, h_dim).astype(jnp.float32)
    w1 = (s0[:, None] * params["w1"]).astype(jnp.bfloat16)
    b1 = (params["b1"].reshape(1, h_dim)
          + (t0 @ params["w1"]).reshape(1, h_dim)).astype(jnp.float32)

    # fused head: [w_loc || w_std] along N, each half padded to `half` lanes
    half = 64 if out_features <= 64 else _round_up(out_features, 128)
    W = 2 * half

    def fold_head(wk, bk):
        w = s1[:, None] * params[wk]
        b = (params[bk].reshape(1, out_features)
             + (t1 @ params[wk]).reshape(1, out_features))
        return (jnp.pad(w, ((0, 0), (0, half - out_features))),
                jnp.pad(b, ((0, 0), (0, half - out_features))))

    wl, bl = fold_head("w_loc", "b_loc")
    ws, bs = fold_head("w_std", "b_std")
    wh = jnp.concatenate([wl, ws], axis=1).astype(jnp.bfloat16)
    bh = jnp.concatenate([bl, bs], axis=1).astype(jnp.float32)

    # ---- batch tile from a VMEM budget (fits v5e/v6e/v7x scoped VMEM) ----
    VMEM_BUDGET = 20 * 1024 * 1024                       # stream budget
    stream_row_bytes = 2 * 4 * d_in + 2 * 4 * W          # dbl-buffered f32 in/out
    weight_bytes = 2 * (2 * (d_in * h_dim + h_dim * h_dim + h_dim * W)
                        + 4 * (2 * h_dim + W))           # dbl-buffered operands
    bb_cap = max(8, (VMEM_BUDGET - weight_bytes) // stream_row_bytes)
    bb = min(block_b, bb_cap, _round_up(B, 8))
    bb = (bb // 16) * 16 if bb >= 16 else 8              # bf16 sublane packing
    grid = (pl.cdiv(B, bb),)

    rep = lambda i: (0, 0)   # replicated operands (constant index_map, no re-DMA)
    in_specs = [
        pl.BlockSpec((bb, d_in), lambda i: (i, 0)),      # xalt tile (f32)
        pl.BlockSpec((d_in, h_dim), rep),                # w0 (bf16)
        pl.BlockSpec((1, h_dim), rep),                   # b0
        pl.BlockSpec((h_dim, h_dim), rep),               # w1 (BN0-folded)
        pl.BlockSpec((1, h_dim), rep),                   # b1 (BN0-folded)
        pl.BlockSpec((h_dim, W), rep),                   # fused head weight
        pl.BlockSpec((1, W), rep),                       # fused head bias
    ]
    out_specs = pl.BlockSpec((bb, W), lambda i: (i, 0))  # lane-dense fused output
    out_shape = jax.ShapeDtypeStruct((B, W), jnp.float32)

    y = pl.pallas_call(
        functools.partial(_nb_encoder_kernel, half),
        out_shape=out_shape,
        grid=grid,
        in_specs=in_specs,
        out_specs=out_specs,
        compiler_params=pltpu.CompilerParams(
            dimension_semantics=("parallel",),
            vmem_limit_bytes=32 * 1024 * 1024),
    )(xalt, w0, b0, w1, b1, wh, bh)

    loc = y[:, :out_features]
    std = y[:, half:half + out_features]
    return loc, std, l


def init_params(key, in_features, out_features, h_dim=32):
    """Deterministic synthetic parameters. Weights stored as (in, out)."""
    ks = jax.random.split(key, 16)

    def lin(kw, kb, fan_in, fan_out):
        s = 1.0 / jnp.sqrt(fan_in)
        w = jax.random.uniform(kw, (fan_in, fan_out), jnp.float32, -s, s)
        b = jax.random.uniform(kb, (1, fan_out), jnp.float32, -s, s)
        return w, b

    p = {}
    p["w0"], p["b0"] = lin(ks[0], ks[1], in_features, h_dim)
    p["w1"], p["b1"] = lin(ks[2], ks[3], h_dim, h_dim)
    p["w_loc"], p["b_loc"] = lin(ks[4], ks[5], h_dim, out_features)
    p["w_std"], p["b_std"] = lin(ks[6], ks[7], h_dim, out_features)
    for i, k0 in ((0, 8), (1, 12)):
        p[f"bn{i}_gamma"] = jax.random.uniform(ks[k0], (h_dim,), jnp.float32, 0.5, 1.5)
        p[f"bn{i}_beta"] = 0.1 * jax.random.normal(ks[k0 + 1], (h_dim,), jnp.float32)
        p[f"bn{i}_mean"] = 0.1 * jax.random.normal(ks[k0 + 2], (h_dim,), jnp.float32)
        p[f"bn{i}_var"] = jax.random.uniform(ks[k0 + 3], (h_dim,), jnp.float32, 0.5, 1.5)
    return p


def reference_forward(x, xalt, params):
    """Pure-JAX f32 reference matching the PyTorch module in eval mode."""
    h = xalt
    for i in range(2):
        z = h @ params[f"w{i}"] + params[f"b{i}"]
        z = jnp.where(z > 0, z, 0.2 * z)
        s = params[f"bn{i}_gamma"] / jnp.sqrt(params[f"bn{i}_var"] + BN_EPS)
        h = (z - params[f"bn{i}_mean"]) * s + params[f"bn{i}_beta"]
    loc = h @ params["w_loc"] + params["b_loc"]
    std = jax.nn.softplus(h @ params["w_std"] + params["b_std"]) + EPS
    l = x.sum(axis=1, keepdims=True)
    return loc, std, l


if __name__ == "__main__":
    # Small shapes consistent with the module: batch=8, in_features=16,
    # h_depth=2, h_dim=32, out_features=8.
    key = jax.random.PRNGKey(0)
    kx, ka, kp = jax.random.split(key, 3)

    B, in_features, h_dim, out_features = 8, 16, 32, 8
    # NB-count-like (non-negative) data for the normalizer path; xalt is the
    # alternative representation actually fed to the encoder MLP.
    x = jax.random.uniform(kx, (B, in_features), jnp.float32, 0.0, 5.0)
    xalt = jax.random.normal(ka, (B, in_features), jnp.float32)
    params = init_params(kp, in_features, out_features, h_dim=h_dim)

    loc, std, l = nb_data_encoder_forward(x, xalt, params, block_b=1024)
    (loc, std, l) = jax.block_until_ready((loc, std, l))

    loc_ref, std_ref, l_ref = reference_forward(x, xalt, params)
    assert loc.shape == (B, out_features)
    assert std.shape == (B, out_features)
    assert l.shape == (B, 1)
    # bf16 matmul operands (f32 accumulation) -> loose tolerance vs f32 ref.
    assert jnp.allclose(loc, loc_ref, atol=2e-2, rtol=2e-2), "loc mismatch"
    assert jnp.allclose(std, std_ref, atol=2e-2, rtol=2e-2), "std mismatch"
    assert jnp.allclose(l, l_ref, atol=1e-4, rtol=1e-5), "normalizer mismatch"
    assert bool(jnp.all(std > 0))

    # TODO(synk): training-mode Dropout(p=0.2) and BatchNorm batch-statistics
    # are omitted -- eval semantics only (running stats folded into weights).
    print("KERNEL_OK")
</pallas_src>

<mosaic_0001>
module attributes {stable_mosaic.version = 11 : i64} {
  func.func @_nb_encoder_kernel(%arg0: i32, %arg1: memref<8x16xf32, #tpu.memory_space<vmem>>, %arg2: memref<16x32xbf16, #tpu.memory_space<vmem>>, %arg3: memref<1x32xf32, #tpu.memory_space<vmem>>, %arg4: memref<32x32xbf16, #tpu.memory_space<vmem>>, %arg5: memref<1x32xf32, #tpu.memory_space<vmem>>, %arg6: memref<32x128xbf16, #tpu.memory_space<vmem>>, %arg7: memref<1x128xf32, #tpu.memory_space<vmem>>, %arg8: memref<8x128xf32, #tpu.memory_space<vmem>>) attributes {dimension_semantics = [#tpu.dimension_semantics<parallel>], iteration_bounds = array<i64: 1>, scalar_prefetch = 0 : i64, scratch_operands = 0 : i64, tpu.core_type = #tpu.core_type<tc>, window_params = [{transform_indices = @transform_0, window_bounds = array<i64: 8, 16>}, {pipeline_mode = #tpu.pipeline_mode<synchronous>, transform_indices = @transform_1, window_bounds = array<i64: 16, 32>}, {pipeline_mode = #tpu.pipeline_mode<synchronous>, transform_indices = @transform_2, window_bounds = array<i64: 1, 32>}, {pipeline_mode = #tpu.pipeline_mode<synchronous>, transform_indices = @transform_3, window_bounds = array<i64: 32, 32>}, {pipeline_mode = #tpu.pipeline_mode<synchronous>, transform_indices = @transform_4, window_bounds = array<i64: 1, 32>}, {pipeline_mode = #tpu.pipeline_mode<synchronous>, transform_indices = @transform_5, window_bounds = array<i64: 32, 128>}, {pipeline_mode = #tpu.pipeline_mode<synchronous>, transform_indices = @transform_6, window_bounds = array<i64: 1, 128>}, {transform_indices = @transform_7, window_bounds = array<i64: 8, 128>}]} {
    %c0 = arith.constant 0 : index
    %c0_0 = arith.constant 0 : index
    %0 = vector.load %arg1[%c0, %c0_0] : memref<8x16xf32, #tpu.memory_space<vmem>>, vector<8x16xf32>
    %1 = arith.truncf %0 : vector<8x16xf32> to vector<8x16xbf16>
    %c0_1 = arith.constant 0 : index
    %c0_2 = arith.constant 0 : index
    %2 = vector.load %arg2[%c0_1, %c0_2] : memref<16x32xbf16, #tpu.memory_space<vmem>>, vector<16x32xbf16>
    %cst = arith.constant dense<0.000000e+00> : vector<8x32xf32>
    %3 = tpu.matmul %1, %2, %cst {dimension_numbers = #tpu.dot_dimension_numbers<[1], [0], [0], [1], [0, 0, 1, 1], [], []>} : vector<8x16xbf16>, vector<16x32xbf16>, vector<8x32xf32> -> vector<8x32xf32>
    %c0_3 = arith.constant 0 : index
    %c0_4 = arith.constant 0 : index
    %4 = vector.load %arg3[%c0_3, %c0_4] : memref<1x32xf32, #tpu.memory_space<vmem>>, vector<1x32xf32>
    %5 = vector.broadcast %4 : vector<1x32xf32> to vector<8x32xf32>
    %6 = arith.addf %3, %5 : vector<8x32xf32>
    %cst_5 = arith.constant 0.000000e+00 : f32
    %7 = vector.broadcast %cst_5 : f32 to vector<8x32xf32>
    %8 = arith.cmpf ogt, %6, %7 : vector<8x32xf32>
    %cst_6 = arith.constant 2.000000e-01 : f32
    %9 = vector.broadcast %cst_6 : f32 to vector<8x32xf32>
    %10 = arith.mulf %9, %6 : vector<8x32xf32>
    %11 = arith.select %8, %6, %10 : vector<8x32xi1>, vector<8x32xf32>
    %12 = arith.truncf %11 : vector<8x32xf32> to vector<8x32xbf16>
    %c0_7 = arith.constant 0 : index
    %c0_8 = arith.constant 0 : index
    %13 = vector.load %arg4[%c0_7, %c0_8] : memref<32x32xbf16, #tpu.memory_space<vmem>>, vector<32x32xbf16>
    %cst_9 = arith.constant dense<0.000000e+00> : vector<8x32xf32>
    %14 = tpu.matmul %12, %13, %cst_9 {dimension_numbers = #tpu.dot_dimension_numbers<[1], [0], [0], [1], [0, 0, 1, 1], [], []>} : vector<8x32xbf16>, vector<32x32xbf16>, vector<8x32xf32> -> vector<8x32xf32>
    %c0_10 = arith.constant 0 : index
    %c0_11 = arith.constant 0 : index
    %15 = vector.load %arg5[%c0_10, %c0_11] : memref<1x32xf32, #tpu.memory_space<vmem>>, vector<1x32xf32>
    %16 = vector.broadcast %15 : vector<1x32xf32> to vector<8x32xf32>
    %17 = arith.addf %14, %16 : vector<8x32xf32>
    %cst_12 = arith.constant 0.000000e+00 : f32
    %18 = vector.broadcast %cst_12 : f32 to vector<8x32xf32>
    %19 = arith.cmpf ogt, %17, %18 : vector<8x32xf32>
    %cst_13 = arith.constant 2.000000e-01 : f32
    %20 = vector.broadcast %cst_13 : f32 to vector<8x32xf32>
    %21 = arith.mulf %20, %17 : vector<8x32xf32>
    %22 = arith.select %19, %17, %21 : vector<8x32xi1>, vector<8x32xf32>
    %23 = arith.truncf %22 : vector<8x32xf32> to vector<8x32xbf16>
    %c0_14 = arith.constant 0 : index
    %c0_15 = arith.constant 0 : index
    %24 = vector.load %arg6[%c0_14, %c0_15] : memref<32x128xbf16, #tpu.memory_space<vmem>>, vector<32x128xbf16>
    %cst_16 = arith.constant dense<0.000000e+00> : vector<8x128xf32>
    %25 = tpu.matmul %23, %24, %cst_16 {dimension_numbers = #tpu.dot_dimension_numbers<[1], [0], [0], [1], [0, 0, 1, 1], [], []>} : vector<8x32xbf16>, vector<32x128xbf16>, vector<8x128xf32> -> vector<8x128xf32>
    %c0_17 = arith.constant 0 : index
    %c0_18 = arith.constant 0 : index
    %26 = vector.load %arg7[%c0_17, %c0_18] : memref<1x128xf32, #tpu.memory_space<vmem>>, vector<1x128xf32>
    %27 = vector.broadcast %26 : vector<1x128xf32> to vector<8x128xf32>
    %28 = arith.addf %25, %27 : vector<8x128xf32>
    %29 = tpu.iota {dimensions = array<i32: 1>} : vector<8x128xi32>
    %c64_i32 = arith.constant 64 : i32
    %30 = vector.broadcast %c64_i32 : i32 to vector<8x128xi32>
    %31 = arith.cmpi sge, %29, %30 : vector<8x128xi32>
    %cst_19 = arith.constant 0.000000e+00 : f32
    %32 = vector.broadcast %cst_19 : f32 to vector<8x128xf32>
    %33 = arith.maximumf %28, %32 : vector<8x128xf32>
    %34 = math.absf %28 : vector<8x128xf32>
    %cst_20 = arith.constant 0.000000e+00 : f32
    %35 = vector.broadcast %cst_20 : f32 to vector<8x128xf32>
    %36 = arith.subf %35, %34 : vector<8x128xf32>
    %37 = math.exp %36 : vector<8x128xf32>
    %38 = math.log1p %37 : vector<8x128xf32>
    %39 = arith.addf %33, %38 : vector<8x128xf32>
    %cst_21 = arith.constant 1.000000e-07 : f32
    %40 = vector.broadcast %cst_21 : f32 to vector<8x128xf32>
    %41 = arith.addf %39, %40 : vector<8x128xf32>
    %42 = arith.select %31, %41, %28 : vector<8x128xi1>, vector<8x128xf32>
    %c0_22 = arith.constant 0 : index
    %c0_23 = arith.constant 0 : index
    %43 = vector.load %arg8[%c0_22, %c0_23] : memref<8x128xf32, #tpu.memory_space<vmem>>, vector<8x128xf32>
    tpu.vector_store %arg8[%c0_22, %c0_23], %42 {strides = array<i32>} : memref<8x128xf32, #tpu.memory_space<vmem>>, vector<8x128xf32>,
    return
  }
  func.func @transform_0(%arg0: i32) -> (i32, i32) {
    %c0_i32 = arith.constant 0 : i32
    %c0_i32_0 = arith.constant 0 : i32
    return %arg0, %c0_i32 : i32, i32
  }
  func.func @transform_1(%arg0: i32) -> (i32, i32) {
    %c0_i32 = arith.constant 0 : i32
    %c0_i32_0 = arith.constant 0 : i32
    %c0_i32_1 = arith.constant 0 : i32
    return %c0_i32, %c0_i32_0 : i32, i32
  }
  func.func @transform_2(%arg0: i32) -> (i32, i32) {
    %c0_i32 = arith.constant 0 : i32
    %c0_i32_0 = arith.constant 0 : i32
    %c0_i32_1 = arith.constant 0 : i32
    return %c0_i32, %c0_i32_0 : i32, i32
  }
  func.func @transform_3(%arg0: i32) -> (i32, i32) {
    %c0_i32 = arith.constant 0 : i32
    %c0_i32_0 = arith.constant 0 : i32
    %c0_i32_1 = arith.constant 0 : i32
    return %c0_i32, %c0_i32_0 : i32, i32
  }
  func.func @transform_4(%arg0: i32) -> (i32, i32) {
    %c0_i32 = arith.constant 0 : i32
    %c0_i32_0 = arith.constant 0 : i32
    %c0_i32_1 = arith.constant 0 : i32
    return %c0_i32, %c0_i32_0 : i32, i32
  }
  func.func @transform_5(%arg0: i32) -> (i32, i32) {
    %c0_i32 = arith.constant 0 : i32
    %c0_i32_0 = arith.constant 0 : i32
    %c0_i32_1 = arith.constant 0 : i32
    return %c0_i32, %c0_i32_0 : i32, i32
  }
  func.func @transform_6(%arg0: i32) -> (i32, i32) {
    %c0_i32 = arith.constant 0 : i32
    %c0_i32_0 = arith.constant 0 : i32
    %c0_i32_1 = arith.constant 0 : i32
    return %c0_i32, %c0_i32_0 : i32, i32
  }
  func.func @transform_7(%arg0: i32) -> (i32, i32) {
    %c0_i32 = arith.constant 0 : i32
    %c0_i32_0 = arith.constant 0 : i32
    return %arg0, %c0_i32 : i32, i32
  }
}

</mosaic_0001>

<llo_original>
// kernel: nb_data_encoder_forward.1
$region0: #{nb_data_encoder_forward.1}
  #allocation0 [shape = 'u32[]', space=smem, size = 0x4, offset = 0x4, fixed_abs, tag = 'smem constant byte address 0x4 - core index']
  #allocation1 [shape = 'u32[144,128]{1,0:T(1,128)}', space=vmem, size = 0x12000, scoped, tag = 'internal scratch']
  %s0 = inlined_call_operand.vmem [shape: f32[8,16], index: 0, kind: input, shape index: {}]
  %s1 = inlined_call_operand.vmem [shape: bf16[16,32], index: 1, kind: input, shape index: {}]
  %s2 = inlined_call_operand.vmem [shape: f32[1,32], index: 2, kind: input, shape index: {}]
  %s3 = inlined_call_operand.vmem [shape: bf16[32,32], index: 3, kind: input, shape index: {}]
  %s4 = inlined_call_operand.vmem [shape: f32[1,32], index: 4, kind: input, shape index: {}]
  %s5 = inlined_call_operand.vmem [shape: bf16[32,128], index: 5, kind: input, shape index: {}]
  %s6 = inlined_call_operand.vmem [shape: f32[1,128], index: 6, kind: input, shape index: {}]
  %s7 = inlined_call_operand.vmem [shape: f32[8,128], index: 7, kind: output, shape index: {}]
  %s8 = sld [smem:[#allocation0]]
  $region38: #{nb_data_encoder_forward.1} parent=0
    _
  %s10 = ssub.s32 1, %s8
  %s11 = scalar_select 0, %s10, %s8
  // Predicated region
  $region2: #{nb_data_encoder_forward.1} parent=0 // pred_check
    _
  $region3: #{nb_data_encoder_forward.1} parent=0 // pred_check_branch
    %13 = sbr.rel (0) target = $region5
  $region4: #{nb_data_encoder_forward.1} parent=0 // pred_region
    _
  $region5: #{nb_data_encoder_forward.1} parent=0 // pred_fallthru
    _
  // Predicated region
  $region6: #{nb_data_encoder_forward.1} parent=0 // pred_check
    _
  $region7: #{nb_data_encoder_forward.1} parent=0 // pred_check_branch
    %15 = sbr.rel (0) target = $region9
  $region8: #{nb_data_encoder_forward.1} parent=0 // pred_region
    _
  $region9: #{nb_data_encoder_forward.1} parent=0 // pred_fallthru
    _
  // Predicated region
  $region10: #{nb_data_encoder_forward.1} parent=0 // pred_check
    _
  $region11: #{nb_data_encoder_forward.1} parent=0 // pred_check_branch
    %17 = sbr.rel (0) target = $region13
  $region12: #{nb_data_encoder_forward.1} parent=0 // pred_region
    _
  $region13: #{nb_data_encoder_forward.1} parent=0 // pred_fallthru
    _
  // Predicated region
  $region14: #{nb_data_encoder_forward.1} parent=0 // pred_check
    _
  $region15: #{nb_data_encoder_forward.1} parent=0 // pred_check_branch
    %19 = sbr.rel (0) target = $region17
  $region16: #{nb_data_encoder_forward.1} parent=0 // pred_region
    _
  $region17: #{nb_data_encoder_forward.1} parent=0 // pred_fallthru
    _
  // Predicated region
  $region18: #{nb_data_encoder_forward.1} parent=0 // pred_check
    _
  $region19: #{nb_data_encoder_forward.1} parent=0 // pred_check_branch
    %21 = sbr.rel (0) target = $region21
  $region20: #{nb_data_encoder_forward.1} parent=0 // pred_region
    _
  $region21: #{nb_data_encoder_forward.1} parent=0 // pred_fallthru
    _
  // Predicated region
  $region22: #{nb_data_encoder_forward.1} parent=0 // pred_check
    _
  $region23: #{nb_data_encoder_forward.1} parent=0 // pred_check_branch
    %23 = sbr.rel (0) target = $region25
  $region24: #{nb_data_encoder_forward.1} parent=0 // pred_region
    _
  $region25: #{nb_data_encoder_forward.1} parent=0 // pred_fallthru
    _
  // Predicated region
  $region26: #{nb_data_encoder_forward.1} parent=0 // pred_check
    _
  $region27: #{nb_data_encoder_forward.1} parent=0 // pred_check_branch
    %25 = sbr.rel (0) target = $region29
  $region28: #{nb_data_encoder_forward.1} parent=0 // pred_region
    _
  $region29: #{nb_data_encoder_forward.1} parent=0 // pred_fallthru
    _
  %v27 = vld [vmem:[%s0] sm:$0xff]
  %v28 = vpack.c.bf16 %v27, %v27
  %v29 = vld [vmem:[%s1] sm:$0xf]
  %v30 = vld [vmem:[%s1 + $0x4] sm:$0xf]
  %v31 = vld [vmem:[%s2] sm:$0x1]
  %v33 = vlaneseq
  %v34 = vshrl.u32 %v33, 7
  %v35 = vsub.s32 0, %v34
  %v36 = vrot.slane %v31, %v35
  %v40 = vunpack.c.l.b16 %v29
  %v41 = vunpack.c.l.b16 %v30
  %v42 = vpack.c.b16 %v41, %v40
  %vm44 = vcmask 130048
  %v46 = vsel %vm44, %v28, 0
  %48 = vmatprep.subr.bf16.mxu0 0
  %49 = vmatpush1.bf16.msra.mxu0 %v42
  %50 = vmatprep.subr.bf16.mxu0 0
  %51 = vmatpush1.bf16.msra.mxu0 0
  %52 = vmatprep.subr.bf16.mxu0 0
  %53 = vmatpush1.bf16.msra.mxu0 0
  %54 = vmatprep.subr.bf16.mxu0 0
  %55 = vmatpush1.bf16.msra.mxu0 0
  %56 = vmatprep.subr.bf16.mxu0 0
  %57 = vmatpush1.bf16.msra.mxu0 0
  %58 = vmatprep.subr.bf16.mxu0 0
  %59 = vmatpush1.bf16.msra.mxu0 0
  %60 = vmatprep.subr.bf16.mxu0 0
  %61 = vmatpush1.bf16.msra.mxu0 0
  %62 = vmatprep.subr.bf16.mxu0 0
  %63 = vmatpush1.bf16.msra.mxu0 0
  %64 = vmatprep.subr.bf16.mxu0 0
  %65 = vmatpush1.bf16.msra.mxu0 0
  %66 = vmatprep.subr.bf16.mxu0 0
  %67 = vmatpush1.bf16.msra.mxu0 0
  %68 = vmatprep.subr.bf16.mxu0 0
  %69 = vmatpush1.bf16.msra.mxu0 0
  %70 = vmatprep.subr.bf16.mxu0 0
  %71 = vmatpush1.bf16.msra.mxu0 0
  %72 = vmatprep.subr.bf16.mxu0 0
  %73 = vmatpush1.bf16.msra.mxu0 0
  %74 = vmatprep.subr.bf16.mxu0 0
  %75 = vmatpush1.bf16.msra.mxu0 0
  %76 = vmatprep.subr.bf16.mxu0 0
  %77 = vmatpush1.bf16.msra.mxu0 0
  %78 = vmatprep.subr.bf16.mxu0 0
  %79 = vmatpush1.bf16.msra.mxu0 0
  %80 = vmatprep.mubr.bf16.mxu0 0
  %81 = vmatmul.mubr.bf16.gmra.mrb[0].mxu0 %v46
  %v82 = vpop.f32.mrb[0].mxu0
  %v83 = vadd.f32 %v36, %v82
  %v84 = vpop.f32.mrb[0].mxu0
  %v85 = vpop.f32.mrb[0].mxu0
  %v86 = vpop.f32.mrb[0].mxu0
  %87 = vdwg.mxu0
  %vm88 = vcmp.gt.f32.partialorder %v83, 0.0
  %v89 = vmul.f32 %v83, 0.2
  %v90 = vsel %vm88, %v83, %v89
  %v91 = vpack.c.bf16 %v90, %v90
  %v92 = vld [vmem:[%s3] sm:$0xf]
  %v93 = vld [vmem:[%s3 + $0x4] sm:$0xf]
  %v94 = vld [vmem:[%s3 + $0x8] sm:$0xf]
  %v95 = vld [vmem:[%s3 + $0xc] sm:$0xf]
  %v96 = vld [vmem:[%s4] sm:$0x1]
  %v98 = vlaneseq
  %v99 = vshrl.u32 %v98, 7
  %v100 = vsub.s32 0, %v99
  %v101 = vrot.slane %v96, %v100
  %v107 = vunpack.c.l.b16 %v92
  %v108 = vunpack.c.l.b16 %v93
  %v109 = vunpack.c.l.b16 %v94
  %v110 = vunpack.c.l.b16 %v95
  %v111 = vpack.c.b16 %v108, %v107
  %v112 = vpack.c.b16 %v110, %v109
  %vm115 = vcmask 261120
  %v117 = vsel %vm115, %v91, 0
  %119 = vmatprep.subr.bf16.mxu0 0
  %120 = vmatpush1.bf16.msra.mxu0 %v111
  %121 = vmatprep.subr.bf16.mxu0 0
  %122 = vmatpush1.bf16.msra.mxu0 %v112
  %123 = vmatprep.subr.bf16.mxu0 0
  %124 = vmatpush1.bf16.msra.mxu0 0
  %125 = vmatprep.subr.bf16.mxu0 0
  %126 = vmatpush1.bf16.msra.mxu0 0
  %127 = vmatprep.subr.bf16.mxu0 0
  %128 = vmatpush1.bf16.msra.mxu0 0
  %129 = vmatprep.subr.bf16.mxu0 0
  %130 = vmatpush1.bf16.msra.mxu0 0
  %131 = vmatprep.subr.bf16.mxu0 0
  %132 = vmatpush1.bf16.msra.mxu0 0
  %133 = vmatprep.subr.bf16.mxu0 0
  %134 = vmatpush1.bf16.msra.mxu0 0
  %135 = vmatprep.subr.bf16.mxu0 0
  %136 = vmatpush1.bf16.msra.mxu0 0
  %137 = vmatprep.subr.bf16.mxu0 0
  %138 = vmatpush1.bf16.msra.mxu0 0
  %139 = vmatprep.subr.bf16.mxu0 0
  %140 = vmatpush1.bf16.msra.mxu0 0
  %141 = vmatprep.subr.bf16.mxu0 0
  %142 = vmatpush1.bf16.msra.mxu0 0
  %143 = vmatprep.subr.bf16.mxu0 0
  %144 = vmatpush1.bf16.msra.mxu0 0
  %145 = vmatprep.subr.bf16.mxu0 0
  %146 = vmatpush1.bf16.msra.mxu0 0
  %147 = vmatprep.subr.bf16.mxu0 0
  %148 = vmatpush1.bf16.msra.mxu0 0
  %149 = vmatprep.subr.bf16.mxu0 0
  %150 = vmatpush1.bf16.msra.mxu0 0
  %151 = vmatprep.mubr.bf16.mxu0 0
  %152 = vmatmul.mubr.bf16.gmra.mrb[0].mxu0 %v117
  %v153 = vpop.f32.mrb[0].mxu0
  %v154 = vadd.f32 %v101, %v153
  %v155 = vpop.f32.mrb[0].mxu0
  %v156 = vpop.f32.mrb[0].mxu0
  %v157 = vpop.f32.mrb[0].mxu0
  %158 = vdwg.mxu0
  %vm159 = vcmp.gt.f32.partialorder %v154, 0.0
  %v160 = vmul.f32 %v154, 0.2
  %v161 = vsel %vm159, %v154, %v160
  %v162 = vpack.c.bf16 %v161, %v161
  %v163 = vld [vmem:[%s5] sm:$0xf]
  %v164 = vld [vmem:[%s5 + $0x4] sm:$0xf]
  %v165 = vld [vmem:[%s5 + $0x8] sm:$0xf]
  %v166 = vld [vmem:[%s5 + $0xc] sm:$0xf]
  %v167 = vld [vmem:[%s6] sm:$0x1]
  %v169 = vlaneseq
  %v170 = vshrl.u32 %v169, 7
  %v171 = vsub.s32 0, %v170
  %v172 = vrot.slane %v167, %v171
  %v178 = vunpack.c.l.b16 %v163
  %v179 = vunpack.c.l.b16 %v164
  %v180 = vunpack.c.l.b16 %v165
  %v181 = vunpack.c.l.b16 %v166
  %v182 = vpack.c.b16 %v179, %v178
  %v183 = vpack.c.b16 %v181, %v180
  %v187 = vsel %vm115, %v162, 0
  %189 = vmatprep.subr.bf16.mxu0 0
  %190 = vmatpush1.bf16.msra.mxu0 %v182
  %191 = vmatprep.subr.bf16.mxu0 0
  %192 = vmatpush1.bf16.msra.mxu0 %v183
  %193 = vmatprep.subr.bf16.mxu0 0
  %194 = vmatpush1.bf16.msra.mxu0 0
  %195 = vmatprep.subr.bf16.mxu0 0
  %196 = vmatpush1.bf16.msra.mxu0 0
  %197 = vmatprep.subr.bf16.mxu0 0
  %198 = vmatpush1.bf16.msra.mxu0 0
  %199 = vmatprep.subr.bf16.mxu0 0
  %200 = vmatpush1.bf16.msra.mxu0 0
  %201 = vmatprep.subr.bf16.mxu0 0
  %202 = vmatpush1.bf16.msra.mxu0 0
  %203 = vmatprep.subr.bf16.mxu0 0
  %204 = vmatpush1.bf16.msra.mxu0 0
  %205 = vmatprep.subr.bf16.mxu0 0
  %206 = vmatpush1.bf16.msra.mxu0 0
  %207 = vmatprep.subr.bf16.mxu0 0
  %208 = vmatpush1.bf16.msra.mxu0 0
  %209 = vmatprep.subr.bf16.mxu0 0
  %210 = vmatpush1.bf16.msra.mxu0 0
  %211 = vmatprep.subr.bf16.mxu0 0
  %212 = vmatpush1.bf16.msra.mxu0 0
  %213 = vmatprep.subr.bf16.mxu0 0
  %214 = vmatpush1.bf16.msra.mxu0 0
  %215 = vmatprep.subr.bf16.mxu0 0
  %216 = vmatpush1.bf16.msra.mxu0 0
  %217 = vmatprep.subr.bf16.mxu0 0
  %218 = vmatpush1.bf16.msra.mxu0 0
  %219 = vmatprep.subr.bf16.mxu0 0
  %220 = vmatpush1.bf16.msra.mxu0 0
  %221 = vmatprep.mubr.bf16.mxu0 0
  %222 = vmatmul.mubr.bf16.gmra.mrb[0].mxu0 %v187
  %v223 = vpop.f32.mrb[0].mxu0
  %v224 = vadd.f32 %v172, %v223
  %v225 = vpop.f32.mrb[0].mxu0
  %v226 = vpop.f32.mrb[0].mxu0
  %v227 = vpop.f32.mrb[0].mxu0
  %228 = vdwg.mxu0
  %v229 = vlaneseq
  %v230 = vand.u32 %v229, 127
  %vm231 = vcmp.ge.s32.totalorder %v230, 64
  %v232 = vmax.f32 %v224, 0.0
  %v233 = vand.u32 2147483647, %v224
  %v234 = vsub.f32 0.0, %v233
  %v235 = vmul.f32 %v234, 1.442695
  %v236 = vpow.pop %v235
  %v237 = vadd.f32 %v236, 1.0
  %v238 = vlog2.pop %v237
  %v239 = vmul.f32 %v238, 0.6931472
  %v240 = vmul.f32 -0.5, %v236
  %v241 = vadd.f32 %v240, 1.0
  %v242 = vmul.f32 %v241, %v236
  %v243 = vand.u32 2147483647, %v236
  %vm244 = vcmp.lt.f32.partialorder %v243, 0.0004427343
  %v245 = vsel %vm244, %v242, %v239
  %v246 = vadd.f32 %v232, %v245
  %v247 = vadd.f32 %v246, 1e-07
  %v248 = vsel %vm231, %v247, %v224
  %249 = vst [vmem:[%s7] sm:$0xff] %v248
  // Predicated region
  $region30: #{nb_data_encoder_forward.1} parent=0 // pred_check
    _
  $region31: #{nb_data_encoder_forward.1} parent=0 // pred_check_branch
    %251 = sbr.rel (0) target = $region33
  $region32: #{nb_data_encoder_forward.1} parent=0 // pred_region
    _
  $region33: #{nb_data_encoder_forward.1} parent=0 // pred_fallthru
    _
  // Predicated region
  $region34: #{nb_data_encoder_forward.1} parent=0 // pred_check
    _
  $region35: #{nb_data_encoder_forward.1} parent=0 // pred_check_branch
    %253 = sbr.rel (0) target = $region37
  $region36: #{nb_data_encoder_forward.1} parent=0 // pred_region
    _
  $region37: #{nb_data_encoder_forward.1} parent=0 // pred_fallthru
    _

</llo_original>
